<compile_context>
chip_gen: v5e
topology: v5e:2x2
jax: 0.10.0
libtpu: 0.0.40
codegen_flags: <defaults>
</compile_context>

<pallas_src>
import functools

import jax
import jax.numpy as jnp
from jax.experimental import pallas as pl
from jax.experimental.pallas import tpu as pltpu


_M_TILE_CAP = 512     # single M tile when the batch fits in this many rows
_N_TILE_CAP = 512
_K_SINGLE_CAP = 2048  # single-K (no accumulator) fast path threshold
_K_TILE_CAP = 1024    # K tile size when K must be split


def _round_up(x, m):
    return ((x + m - 1) // m) * m


def _choose_tile(dim, unit, cap, min_tiles=1):
    """Largest multiple of `unit` that divides `dim`, is <= cap, and yields at
    least `min_tiles` tiles. `dim` must already be a multiple of `unit`.
    Falls back to min_tiles=1, then to `unit`."""
    best = None
    t = unit
    limit = min(dim, cap)
    while t <= limit:
        if dim % t == 0 and dim // t >= min_tiles:
            best = t
        t += unit
    if best is None:
        if min_tiles > 1:
            return _choose_tile(dim, unit, cap, min_tiles=1)
        return unit
    return best


def _pad_cast_2d(a, rows, cols, dtype):
    """Cast (if needed) and zero-pad (if needed) to (rows, cols)."""
    if a.dtype != dtype:
        a = a.astype(dtype)
    pr, pc = rows - a.shape[0], cols - a.shape[1]
    if pr or pc:
        a = jnp.pad(a, ((0, pr), (0, pc)))
    return a


def _drift_kernel_single_k(x_ref, w_ref, b_ref, o_ref, *, activation):
    # Whole K in one block: no accumulator round-trip, write the tile once.
    out = jnp.dot(x_ref[...], w_ref[...], preferred_element_type=jnp.float32)
    out = out + b_ref[...]                       # (tm, tn) + (1, tn) broadcast
    if activation is not None:
        out = activation(out)
    o_ref[...] = out.astype(o_ref.dtype)
    # TODO(synk): F.dropout is training-only; this kernel implements the
    # eval-mode (module.eval()) forward pass, where dropout is the identity.


def _drift_kernel_multi_k(x_ref, w_ref, b_ref, o_ref, acc_ref, *, activation):
    # grid = (M tiles, N tiles, K tiles); K is the reduction axis (last).
    k = pl.program_id(2)

    @pl.when(k == 0)
    def _():
        acc_ref[...] = jnp.zeros_like(acc_ref)

    acc_ref[...] += jnp.dot(
        x_ref[...], w_ref[...], preferred_element_type=jnp.float32
    )

    @pl.when(k == pl.num_programs(2) - 1)
    def _():
        out = acc_ref[...] + b_ref[...]
        if activation is not None:
            out = activation(out)
        o_ref[...] = out.astype(o_ref.dtype)


def drift_layer(x, weight_t, bias, activation=None, *,
                compute_dtype=jnp.bfloat16, out_dtype=None):
    """Pallas equivalent of DriftLayer.forward (eval mode).

    x:        [N, in_feats]
    weight_t: [in_feats, out_feats]  (transpose of PyTorch nn.Linear.weight)
    bias:     [out_feats] or [1, out_feats]
    """
    n, in_feats = x.shape
    in_feats_w, out_feats = weight_t.shape
    assert in_feats == in_feats_w
    bias = bias.reshape(1, -1)
    assert bias.shape[1] == out_feats
    if out_dtype is None:
        out_dtype = x.dtype

    # Pad dims to dtype granularity only: 16 rows (bf16 sublane packing),
    # 128 lanes for the contraction / output feature axes.
    m_r = _round_up(n, 16)
    n_r = _round_up(out_feats, 128)
    k_r = _round_up(in_feats, 128)

    # Tiles divide the padded dims exactly (no extra padding):
    #  - single M tile when the batch fits -> W^T streamed from HBM once;
    #  - >= 2 lane-dense N tiles when out_feats >= 256 (v7x megacore);
    #  - single K block (no accumulator) when K fits one tile.
    tm = m_r if m_r <= _M_TILE_CAP else _choose_tile(m_r, 16, _M_TILE_CAP)
    tn = _choose_tile(n_r, 128, _N_TILE_CAP,
                      min_tiles=2 if n_r >= 256 else 1)
    single_k = k_r <= _K_SINGLE_CAP
    tk = k_r if single_k else _choose_tile(k_r, 128, _K_TILE_CAP)

    # One cast + one pad per operand at most; skipped when already aligned.
    # (In a real model, weight_t / bias would be pre-padded & pre-cast once.)
    xp = _pad_cast_2d(x, m_r, k_r, compute_dtype)
    wp = _pad_cast_2d(weight_t, k_r, n_r, compute_dtype)
    bp = _pad_cast_2d(bias, 1, n_r, jnp.float32)

    flops = 2 * m_r * k_r * n_r
    bytes_accessed = (
        xp.size * xp.dtype.itemsize
        + wp.size * wp.dtype.itemsize
        + bp.size * bp.dtype.itemsize
        + m_r * n_r * jnp.dtype(out_dtype).itemsize
    )
    transcendentals = m_r * n_r if activation is not None else 0

    if single_k:
        grid = (m_r // tm, n_r // tn)
        in_specs = [
            pl.BlockSpec((tm, tk), lambda i, j: (i, 0)),   # x (full K)
            pl.BlockSpec((tk, tn), lambda i, j: (0, j)),   # W^T (full K)
            pl.BlockSpec((1, tn), lambda i, j: (0, j)),    # bias
        ]
        out_spec = pl.BlockSpec((tm, tn), lambda i, j: (i, j))
        scratch = []
        kernel = functools.partial(_drift_kernel_single_k, activation=activation)
        dims = ("parallel", "parallel")
    else:
        grid = (m_r // tm, n_r // tn, k_r // tk)
        in_specs = [
            pl.BlockSpec((tm, tk), lambda i, j, k: (i, k)),   # x tile
            pl.BlockSpec((tk, tn), lambda i, j, k: (k, j)),   # W^T tile
            pl.BlockSpec((1, tn), lambda i, j, k: (0, j)),    # bias (resident)
        ]
        out_spec = pl.BlockSpec((tm, tn), lambda i, j, k: (i, j))
        scratch = [pltpu.VMEM((tm, tn), jnp.float32)]
        kernel = functools.partial(_drift_kernel_multi_k, activation=activation)
        dims = ("parallel", "parallel", "arbitrary")

    out_padded = pl.pallas_call(
        kernel,
        out_shape=jax.ShapeDtypeStruct((m_r, n_r), out_dtype),
        grid_spec=pltpu.PrefetchScalarGridSpec(
            num_scalar_prefetch=0,
            grid=grid,
            in_specs=in_specs,
            out_specs=out_spec,
            scratch_shapes=scratch,
        ),
        compiler_params=pltpu.CompilerParams(dimension_semantics=dims),
        cost_estimate=pl.CostEstimate(
            flops=flops,
            bytes_accessed=bytes_accessed,
            transcendentals=transcendentals,
        ),
    )(xp, wp, bp)

    if (m_r, n_r) == (n, out_feats):
        return out_padded
    return out_padded[:n, :out_feats]


def _ref_forward(x, weight_t, bias, activation=None,
                 compute_dtype=jnp.bfloat16):
    # Same numerics as the kernel: bf16 operands, f32 accumulate/epilogue.
    y = jnp.dot(x.astype(compute_dtype), weight_t.astype(compute_dtype),
                preferred_element_type=jnp.float32)
    y = y + bias.reshape(1, -1).astype(jnp.float32)
    if activation is not None:
        y = activation(y)
    return y.astype(x.dtype)


def _make_inputs(key, n, in_feats, out_feats):
    kx, kw, kb = jax.random.split(key, 3)
    x = jax.random.normal(kx, (n, in_feats), dtype=jnp.float32)
    # nn.Linear-style init: U(-1/sqrt(in), 1/sqrt(in)).
    bound = 1.0 / (in_feats ** 0.5)
    # PyTorch weight is [out, in]; we store the transpose [in, out].
    weight_t = jax.random.uniform(
        kw, (in_feats, out_feats), dtype=jnp.float32, minval=-bound, maxval=bound)
    bias = jax.random.uniform(
        kb, (1, out_feats), dtype=jnp.float32, minval=-bound, maxval=bound)
    return x, weight_t, bias


if __name__ == "__main__":
    key = jax.random.PRNGKey(0)
    k1, k2 = jax.random.split(key)

    # Case 1: tiny shapes implied by the module, activation=None.
    # Exercises: single M tile, single K block (fast path), lane padding.
    N1, IN1, OUT1 = 8, 32, 32
    x1, w1, b1 = _make_inputs(k1, N1, IN1, OUT1)
    fwd1 = jax.jit(functools.partial(drift_layer, activation=None))
    out1 = jax.block_until_ready(fwd1(x1, w1, b1))
    ref1 = _ref_forward(x1, w1, b1, activation=None)
    assert out1.shape == (N1, OUT1)
    assert jnp.allclose(out1, ref1, atol=2e-3, rtol=2e-3), "mismatch (case 1)"

    # Case 2: small ragged shapes + tanh activation.
    # Exercises: padding to 16/128 granularity, multiple N tiles (v7x
    # parallelism), single-K fast path with epilogue activation.
    N2, IN2, OUT2 = 40, 200, 300
    x2, w2, b2 = _make_inputs(k2, N2, IN2, OUT2)
    fwd2 = jax.jit(functools.partial(drift_layer, activation=jnp.tanh))
    out2 = jax.block_until_ready(fwd2(x2, w2, b2))
    ref2 = _ref_forward(x2, w2, b2, activation=jnp.tanh)
    assert out2.shape == (N2, OUT2)
    assert jnp.allclose(out2, ref2, atol=2e-3, rtol=2e-3), "mismatch (case 2)"

    print("KERNEL_OK")
</pallas_src>

<mosaic_0001>
module attributes {stable_mosaic.version = 11 : i64} {
  func.func @_drift_kernel_single_k(%arg0: i32, %arg1: i32, %arg2: memref<16x128xbf16, #tpu.memory_space<vmem>>, %arg3: memref<128x128xbf16, #tpu.memory_space<vmem>>, %arg4: memref<1x128xf32, #tpu.memory_space<vmem>>, %arg5: memref<16x128xf32, #tpu.memory_space<vmem>>) attributes {dimension_semantics = [#tpu.dimension_semantics<parallel>, #tpu.dimension_semantics<parallel>], iteration_bounds = array<i64: 1, 1>, scalar_prefetch = 0 : i64, scratch_operands = 0 : i64, tpu.core_type = #tpu.core_type<tc>, window_params = [{transform_indices = @transform_0, window_bounds = array<i64: 16, 128>}, {transform_indices = @transform_1, window_bounds = array<i64: 128, 128>}, {transform_indices = @transform_2, window_bounds = array<i64: 1, 128>}, {transform_indices = @transform_3, window_bounds = array<i64: 16, 128>}]} {
    %c0 = arith.constant 0 : index
    %c0_0 = arith.constant 0 : index
    %0 = vector.load %arg2[%c0, %c0_0] : memref<16x128xbf16, #tpu.memory_space<vmem>>, vector<16x128xbf16>
    %c0_1 = arith.constant 0 : index
    %c0_2 = arith.constant 0 : index
    %1 = vector.load %arg3[%c0_1, %c0_2] : memref<128x128xbf16, #tpu.memory_space<vmem>>, vector<128x128xbf16>
    %cst = arith.constant dense<0.000000e+00> : vector<16x128xf32>
    %2 = tpu.matmul %0, %1, %cst {dimension_numbers = #tpu.dot_dimension_numbers<[1], [0], [0], [1], [0, 0, 1, 1], [], []>} : vector<16x128xbf16>, vector<128x128xbf16>, vector<16x128xf32> -> vector<16x128xf32>
    %c0_3 = arith.constant 0 : index
    %c0_4 = arith.constant 0 : index
    %3 = vector.load %arg4[%c0_3, %c0_4] : memref<1x128xf32, #tpu.memory_space<vmem>>, vector<1x128xf32>
    %4 = vector.broadcast %3 : vector<1x128xf32> to vector<16x128xf32>
    %5 = arith.addf %2, %4 : vector<16x128xf32>
    %c0_5 = arith.constant 0 : index
    %c0_6 = arith.constant 0 : index
    %6 = vector.load %arg5[%c0_5, %c0_6] : memref<16x128xf32, #tpu.memory_space<vmem>>, vector<16x128xf32>
    tpu.vector_store %arg5[%c0_5, %c0_6], %5 {strides = array<i32>} : memref<16x128xf32, #tpu.memory_space<vmem>>, vector<16x128xf32>,
    return
  }
  func.func @transform_0(%arg0: i32, %arg1: i32) -> (i32, i32) {
    %c0_i32 = arith.constant 0 : i32
    %c0_i32_0 = arith.constant 0 : i32
    return %arg0, %c0_i32 : i32, i32
  }
  func.func @transform_1(%arg0: i32, %arg1: i32) -> (i32, i32) {
    %c0_i32 = arith.constant 0 : i32
    %c0_i32_0 = arith.constant 0 : i32
    return %c0_i32, %arg1 : i32, i32
  }
  func.func @transform_2(%arg0: i32, %arg1: i32) -> (i32, i32) {
    %c0_i32 = arith.constant 0 : i32
    %c0_i32_0 = arith.constant 0 : i32
    return %c0_i32, %arg1 : i32, i32
  }
  func.func @transform_3(%arg0: i32, %arg1: i32) -> (i32, i32) {
    %c0_i32 = arith.constant 0 : i32
    return %arg0, %arg1 : i32, i32
  }
}

</mosaic_0001>

<llo_original>
// kernel: drift_layer.1
$region0: #{drift_layer.1}
  #allocation0 [shape = 'u32[]', space=smem, size = 0x4, offset = 0x4, fixed_abs, tag = 'smem constant byte address 0x4 - core index']
  #allocation1 [shape = 'u32[72,128]{1,0:T(1,128)}', space=vmem, size = 0x9000, scoped, tag = 'internal scratch']
  %s0 = inlined_call_operand.vmem [shape: bf16[16,128], index: 0, kind: input, shape index: {}]
  %s1 = inlined_call_operand.vmem [shape: bf16[128,128], index: 1, kind: input, shape index: {}]
  %s2 = inlined_call_operand.vmem [shape: f32[1,128], index: 2, kind: input, shape index: {}]
  %s3 = inlined_call_operand.vmem [shape: f32[16,128], index: 3, kind: output, shape index: {}]
  %s4 = sld [smem:[#allocation0]]
  $region22: #{drift_layer.1} parent=0
    _
  %s6 = ssub.s32 1, %s4
  %s7 = scalar_select 0, %s6, %s4
  // Predicated region
  $region2: #{drift_layer.1} parent=0 // pred_check
    _
  $region3: #{drift_layer.1} parent=0 // pred_check_branch
    %9 = sbr.rel (0) target = $region5
  $region4: #{drift_layer.1} parent=0 // pred_region
    _
  $region5: #{drift_layer.1} parent=0 // pred_fallthru
    _
  // Predicated region
  $region6: #{drift_layer.1} parent=0 // pred_check
    _
  $region7: #{drift_layer.1} parent=0 // pred_check_branch
    %11 = sbr.rel (0) target = $region9
  $region8: #{drift_layer.1} parent=0 // pred_region
    _
  $region9: #{drift_layer.1} parent=0 // pred_fallthru
    _
  // Predicated region
  $region10: #{drift_layer.1} parent=0 // pred_check
    _
  $region11: #{drift_layer.1} parent=0 // pred_check_branch
    %13 = sbr.rel (0) target = $region13
  $region12: #{drift_layer.1} parent=0 // pred_region
    _
  $region13: #{drift_layer.1} parent=0 // pred_fallthru
    _
  %v14 = vld [vmem:[%s0] sm:$0xf]
  %v15 = vld [vmem:[%s0 + $0x4] sm:$0xf]
  %v16 = vld [vmem:[%s1] sm:$0xf]
  %v17 = vld [vmem:[%s1 + $0x4] sm:$0xf]
  %v18 = vld [vmem:[%s1 + $0x8] sm:$0xf]
  %v19 = vld [vmem:[%s1 + $0xc] sm:$0xf]
  %v20 = vld [vmem:[%s1 + $0x10] sm:$0xf]
  %v21 = vld [vmem:[%s1 + $0x14] sm:$0xf]
  %v22 = vld [vmem:[%s1 + $0x18] sm:$0xf]
  %v23 = vld [vmem:[%s1 + $0x1c] sm:$0xf]
  %v24 = vld [vmem:[%s1 + $0x20] sm:$0xf]
  %v25 = vld [vmem:[%s1 + $0x24] sm:$0xf]
  %v26 = vld [vmem:[%s1 + $0x28] sm:$0xf]
  %v27 = vld [vmem:[%s1 + $0x2c] sm:$0xf]
  %v28 = vld [vmem:[%s1 + $0x30] sm:$0xf]
  %v29 = vld [vmem:[%s1 + $0x34] sm:$0xf]
  %v30 = vld [vmem:[%s1 + $0x38] sm:$0xf]
  %v31 = vld [vmem:[%s1 + $0x3c] sm:$0xf]
  %v32 = vld [vmem:[%s2] sm:$0x1]
  %v34 = vperm.slane %v32, 0
  %v38 = vunpack.c.l.b16 %v14
  %v39 = vunpack.c.l.b16 %v15
  %v40 = vpack.c.b16 %v39, %v38
  %v58 = vunpack.c.l.b16 %v16
  %v59 = vunpack.c.l.b16 %v17
  %v60 = vunpack.c.l.b16 %v18
  %v61 = vunpack.c.l.b16 %v19
  %v62 = vunpack.c.l.b16 %v20
  %v63 = vunpack.c.l.b16 %v21
  %v64 = vunpack.c.l.b16 %v22
  %v65 = vunpack.c.l.b16 %v23
  %v66 = vunpack.c.l.b16 %v24
  %v67 = vunpack.c.l.b16 %v25
  %v68 = vunpack.c.l.b16 %v26
  %v69 = vunpack.c.l.b16 %v27
  %v70 = vunpack.c.l.b16 %v28
  %v71 = vunpack.c.l.b16 %v29
  %v72 = vunpack.c.l.b16 %v30
  %v73 = vunpack.c.l.b16 %v31
  %v74 = vpack.c.b16 %v59, %v58
  %v75 = vpack.c.b16 %v61, %v60
  %v76 = vpack.c.b16 %v63, %v62
  %v77 = vpack.c.b16 %v65, %v64
  %v78 = vpack.c.b16 %v67, %v66
  %v79 = vpack.c.b16 %v69, %v68
  %v80 = vpack.c.b16 %v71, %v70
  %v81 = vpack.c.b16 %v73, %v72
  %90 = vmatpush.bf16.msra.mxu0 %v81
  %91 = vmatpush.bf16.msra.mxu0 %v80
  %92 = vmatpush.bf16.msra.mxu0 %v79
  %93 = vmatpush.bf16.msra.mxu0 %v78
  %94 = vmatpush.bf16.msra.mxu0 %v77
  %95 = vmatpush.bf16.msra.mxu0 %v76
  %96 = vmatpush.bf16.msra.mxu0 %v75
  %97 = vmatpush.bf16.msra.mxu0 %v74
  %98 = vmatmul.bf16.gmra.mxu0 %v40
  %v99 = vpop.f32.mrf.mxu0
  %v100 = vadd.f32 %v34, %v99
  %v101 = vpop.f32.mrf.mxu0
  %v102 = vadd.f32 %v34, %v101
  %103 = vdwg.mxu0
  %104 = vst [vmem:[%s3] sm:$0xff] %v100
  %105 = vst [vmem:[%s3 + $0x8] sm:$0xff] %v102
  // Predicated region
  $region14: #{drift_layer.1} parent=0 // pred_check
    _
  $region15: #{drift_layer.1} parent=0 // pred_check_branch
    %107 = sbr.rel (0) target = $region17
  $region16: #{drift_layer.1} parent=0 // pred_region
    _
  $region17: #{drift_layer.1} parent=0 // pred_fallthru
    _
  // Predicated region
  $region18: #{drift_layer.1} parent=0 // pred_check
    _
  $region19: #{drift_layer.1} parent=0 // pred_check_branch
    %109 = sbr.rel (0) target = $region21
  $region20: #{drift_layer.1} parent=0 // pred_region
    _
  $region21: #{drift_layer.1} parent=0 // pred_fallthru
    _

</llo_original>
